<compile_context>
chip_gen: v7x
topology: tpu7x:2x2x1
jax: 0.10.0
libtpu: 0.0.40
codegen_flags: <defaults>
</compile_context>

<pallas_src>
import jax
import jax.numpy as jnp
import numpy as np
from jax.experimental import pallas as pl
from jax.experimental.pallas import tpu as pltpu


def _round_up(n: int, m: int) -> int:
    return ((n + m - 1) // m) * m


def _star_relu_kernel(scale_ref, bias_ref, x_ref, o_ref):
    # scale_ref / bias_ref: (1,) f32 in SMEM; x_ref / o_ref: (tm, W) VMEM tiles.
    x = x_ref[...].astype(jnp.float32)
    r = jnp.maximum(x, 0.0)
    scale = scale_ref[0]
    bias = bias_ref[0]
    o_ref[...] = (scale * (r * r) + bias).astype(o_ref.dtype)


def star_relu(x, scale, bias, *, lane_width: int = 1024,
              tile_bytes: int = 4 * 1024 * 1024, target_steps: int = 8):
    """scale * relu(x)**2 + bias via a tiled Pallas TPU kernel.

    Any shape/dtype: flattens to a lane-dense (rows, W) slab. If x.size is a
    multiple of 128 (typical activations) this is a zero-copy reshape; only
    truly ragged sizes take the (minimal) pad fallback.
    """
    orig_shape = x.shape
    dtype = x.dtype
    total = int(x.size)
    itemsize = jnp.dtype(dtype).itemsize
    # sublane granularity per dtype packing: f32 -> 8, bf16 -> 16, int8/fp8 -> 32
    min_rows = {4: 8, 2: 16, 1: 32}.get(itemsize, 8)

    scale = jnp.asarray(scale, jnp.float32).reshape(1)
    bias = jnp.asarray(bias, jnp.float32).reshape(1)

    # ---- choose lane width: widest multiple of 128 (<= lane_width) dividing
    # total, so the reshape is metadata-only (no jnp.pad HBM copy).
    W = 0
    if total >= 128 and total % 128 == 0:
        start = (min(lane_width, total) // 128) * 128
        for cand in range(start, 0, -128):
            if total % cand == 0:
                W = cand
                break

    flat = x.reshape(-1)
    padded = False
    if W:
        rows = total // W
    else:
        # Ragged total: minimal pad to fill only the last partial row.
        W = lane_width
        rows = pl.cdiv(total, W)
        pad = rows * W - total
        if pad:
            flat = jnp.pad(flat, (0, pad))
            padded = True
    x2 = flat.reshape(rows, W)

    # ---- row tile: ~tile_bytes per tile, dtype-aware, but capped so the grid
    # has ~target_steps steps (feeds both v7x TensorCores + pipeline overlap).
    if rows <= min_rows:
        tm = rows                      # block == full dim (exempt from 8-row rule)
    else:
        rows_budget = max(min_rows,
                          (tile_bytes // (W * itemsize)) // min_rows * min_rows)
        rows_for_steps = _round_up(pl.cdiv(rows, target_steps), min_rows)
        tm = max(min_rows, min(rows_budget, rows_for_steps, _round_up(rows, min_rows)))
    grid = (pl.cdiv(rows, tm),)        # ragged tail handled by implicit masking

    out2 = pl.pallas_call(
        _star_relu_kernel,
        out_shape=jax.ShapeDtypeStruct(x2.shape, dtype),
        grid_spec=pltpu.PrefetchScalarGridSpec(
            num_scalar_prefetch=0,
            grid=grid,
            in_specs=[
                pl.BlockSpec(memory_space=pltpu.SMEM),        # scale (1,) f32
                pl.BlockSpec(memory_space=pltpu.SMEM),        # bias  (1,) f32
                pl.BlockSpec((tm, W), lambda i: (i, 0)),      # x tile
            ],
            out_specs=pl.BlockSpec((tm, W), lambda i: (i, 0)),
        ),
        compiler_params=pltpu.CompilerParams(
            dimension_semantics=("parallel",),   # shards across v7x's 2 TCs
            vmem_limit_bytes=40 * 1024 * 1024,   # headroom for 4 MiB double-buffers (safe on v5e/v6e/v7x)
        ),
        cost_estimate=pl.CostEstimate(
            flops=3 * total,
            transcendentals=0,
            bytes_accessed=2 * total * itemsize,
        ),
    )(scale, bias, x2)

    if padded:
        return out2.reshape(-1)[:total].reshape(orig_shape)
    return out2.reshape(orig_shape)


if __name__ == "__main__":
    # StarReLU.__init__ defaults: scale = 0.8944 * ones(1), bias = -0.4472 * ones(1)
    scale = jnp.full((1,), 0.8944, dtype=jnp.float32)
    bias = jnp.full((1,), -0.4472, dtype=jnp.float32)

    # Example input: NCHW, batch=2, channels=4, spatial=16x16 (no-pad path).
    key = jax.random.PRNGKey(0)
    x = jax.random.normal(key, (2, 4, 16, 16), dtype=jnp.float32)

    y = jax.block_until_ready(star_relu(x, scale, bias))
    y_ref = scale[0] * jnp.maximum(x, 0.0) ** 2 + bias[0]
    np.testing.assert_allclose(np.asarray(y), np.asarray(y_ref), rtol=1e-6, atol=1e-6)
    assert y.shape == x.shape and y.dtype == x.dtype

    # Odd-sized input (ragged total -> minimal-pad fallback path).
    x_odd = jax.random.normal(jax.random.PRNGKey(1), (3, 5, 7, 11), dtype=jnp.float32)
    y_odd = jax.block_until_ready(star_relu(x_odd, scale, bias))
    y_odd_ref = scale[0] * jnp.maximum(x_odd, 0.0) ** 2 + bias[0]
    np.testing.assert_allclose(np.asarray(y_odd), np.asarray(y_odd_ref),
                               rtol=1e-6, atol=1e-6)

    # bf16 input (dtype-aware tiling path, multi-step grid).
    x_bf = jax.random.normal(jax.random.PRNGKey(2), (2, 8, 16, 128), dtype=jnp.bfloat16)
    y_bf = jax.block_until_ready(star_relu(x_bf, scale, bias))
    y_bf_ref = (scale[0] * jnp.maximum(x_bf.astype(jnp.float32), 0.0) ** 2
                + bias[0]).astype(jnp.bfloat16)
    np.testing.assert_allclose(np.asarray(y_bf, dtype=np.float32),
                               np.asarray(y_bf_ref, dtype=np.float32),
                               rtol=2e-2, atol=2e-2)
    assert y_bf.dtype == x_bf.dtype

    print("KERNEL_OK")
</pallas_src>

<mosaic_0001>
module attributes {stable_mosaic.version = 11 : i64} {
  func.func @_star_relu_kernel(%arg0: i32, %arg1: memref<1xf32, #tpu.memory_space<smem>>, %arg2: memref<1xf32, #tpu.memory_space<smem>>, %arg3: memref<2x1024xf32, #tpu.memory_space<vmem>>, %arg4: memref<2x1024xf32, #tpu.memory_space<vmem>>) attributes {dimension_semantics = [#tpu.dimension_semantics<parallel>], iteration_bounds = array<i64: 1>, scalar_prefetch = 0 : i64, scratch_operands = 0 : i64, tpu.core_type = #tpu.core_type<tc>, window_params = [{transform_indices = @transform_0, window_bounds = array<i64: 1>}, {transform_indices = @transform_1, window_bounds = array<i64: 1>}, {transform_indices = @transform_2, window_bounds = array<i64: 2, 1024>}, {transform_indices = @transform_3, window_bounds = array<i64: 2, 1024>}]} {
    %c0 = arith.constant 0 : index
    %c0_0 = arith.constant 0 : index
    %0 = vector.load %arg3[%c0, %c0_0] : memref<2x1024xf32, #tpu.memory_space<vmem>>, vector<2x1024xf32>
    %cst = arith.constant 0.000000e+00 : f32
    %1 = vector.broadcast %cst : f32 to vector<2x1024xf32>
    %2 = arith.maximumf %0, %1 : vector<2x1024xf32>
    %c0_1 = arith.constant 0 : index
    %3 = memref.load %arg1[%c0_1] : memref<1xf32, #tpu.memory_space<smem>>
    %c0_2 = arith.constant 0 : index
    %4 = memref.load %arg2[%c0_2] : memref<1xf32, #tpu.memory_space<smem>>
    %5 = arith.mulf %2, %2 : vector<2x1024xf32>
    %6 = vector.broadcast %3 : f32 to vector<2x1024xf32>
    %7 = arith.mulf %6, %5 : vector<2x1024xf32>
    %8 = vector.broadcast %4 : f32 to vector<2x1024xf32>
    %9 = arith.addf %7, %8 : vector<2x1024xf32>
    %c0_3 = arith.constant 0 : index
    %c0_4 = arith.constant 0 : index
    %10 = vector.load %arg4[%c0_3, %c0_4] : memref<2x1024xf32, #tpu.memory_space<vmem>>, vector<2x1024xf32>
    tpu.vector_store %arg4[%c0_3, %c0_4], %9 {strides = array<i32>} : memref<2x1024xf32, #tpu.memory_space<vmem>>, vector<2x1024xf32>,
    return
  }
  func.func @transform_0(%arg0: i32) -> i32 {
    %c0_i32 = arith.constant 0 : i32
    %c0_i32_0 = arith.constant 0 : i32
    return %c0_i32 : i32
  }
  func.func @transform_1(%arg0: i32) -> i32 {
    %c0_i32 = arith.constant 0 : i32
    %c0_i32_0 = arith.constant 0 : i32
    return %c0_i32 : i32
  }
  func.func @transform_2(%arg0: i32) -> (i32, i32) {
    %c0_i32 = arith.constant 0 : i32
    %c0_i32_0 = arith.constant 0 : i32
    return %arg0, %c0_i32 : i32, i32
  }
  func.func @transform_3(%arg0: i32) -> (i32, i32) {
    %c0_i32 = arith.constant 0 : i32
    %c0_i32_0 = arith.constant 0 : i32
    return %arg0, %c0_i32 : i32, i32
  }
}

</mosaic_0001>

<llo_original>
// kernel: tpu_custom_call.1
$region0: #{tpu_custom_call.1}
  #allocation0 [shape = 'u32[]', space=smem, size = 0x4, offset = 0x4, fixed_abs, tag = 'smem constant byte address 0x4 - core index']
  #allocation1 [shape = 'u32[144,128]{1,0:T(1,128)}', space=vmem, size = 0x12000, scoped, tag = 'internal scratch']
  #allocation2 [shape = 'f32[1]{0:T(128)S(6)}', space=smem, size = 0x200, scoped, tag = 'scoped memory for tpu_custom_call.1']
  #allocation3 [shape = 'f32[1]{0:T(128)S(6)}', space=smem, size = 0x200, scoped, tag = 'scoped memory for tpu_custom_call.1']
  %s0 = inlined_call_operand.<no memory space> [shape: f32[1], index: 0, kind: input, shape index: {}]
  %s1 = inlined_call_operand.<no memory space> [shape: f32[1], index: 1, kind: input, shape index: {}]
  %s2 = inlined_call_operand.hbm [shape: f32[2,1024], index: 2, kind: input, shape index: {}]
  %s3 = inlined_call_operand.hbm [shape: f32[2,1024], index: 3, kind: output, shape index: {}]
  %s4 = sld [smem:[#allocation0]]
  $region26: #{tpu_custom_call.1} parent=0
    _
  %s6 = ssub.s32 1, %s4
  %s7 = scalar_select 0, %s6, %s4
  %8 = sst [smem:[#allocation2]] %s0
  %9 = sst [smem:[#allocation3]] %s1
  $region1: #{tpu_custom_call.1} parent=0
    #allocation4 [shape = 'u8[8192]{0}', space=vmem, size = 0x2000, scoped, tag = 'input window, operand 2, single buffered']
    #allocation5 [shape = 's32[1]{0}', space=sflag, size = 0x4, scoped, tag = 'scoped memory for tpu_custom_call.1']
    #allocation6 [shape = 's32[1]{0}', space=sflag, size = 0x4, scoped, tag = 'scoped memory for tpu_custom_call.1']
    #allocation7 [shape = 'u8[8192]{0}', space=vmem, size = 0x2000, scoped, tag = 'output window, operand 0, single buffered']
    %10 = vsyncpa [#allocation5], 0
    %11 = vsyncpa [#allocation6], 0
    // Predicated region
    $region2: #{tpu_custom_call.1} parent=1 // pred_check
      _
    $region3: #{tpu_custom_call.1} parent=1 // pred_check_branch
      %13 = sbr.rel (0) target = $region5
    $region4: #{tpu_custom_call.1} parent=1 // pred_region
      _
    $region5: #{tpu_custom_call.1} parent=1 // pred_fallthru
      _
    // Predicated region
    $region6: #{tpu_custom_call.1} parent=1 // pred_check
      _
    $region7: #{tpu_custom_call.1} parent=1 // pred_check_branch
      %15 = sbr.rel (0) target = $region9
    $region8: #{tpu_custom_call.1} parent=1 // pred_region
      _
    $region9: #{tpu_custom_call.1} parent=1 // pred_fallthru
      _
    // Predicated region
    $region10: #{tpu_custom_call.1} parent=1 // pred_check
      _
    $region11: #{tpu_custom_call.1} parent=1 // pred_check_branch
      %17 = sbr.rel (0) target = $region13
    $region12: #{tpu_custom_call.1} parent=1 // pred_region
      %s19 = ssub.s32 256, 256
      %20 = vsyncadd [#allocation5], %s19
      %s22 = sshll.u32 [#allocation4], 4
      %s23 = int_to_ptr.vmem [resolvable:$true] %s22
      %25 = dma.hbm_to_vmem [thread:$0]  %s2, 256, %s23, [#allocation5]
    $region13: #{tpu_custom_call.1} parent=1 // pred_fallthru
      _
    // Predicated region
    $region14: #{tpu_custom_call.1} parent=1 // pred_check
      _
    $region15: #{tpu_custom_call.1} parent=1 // pred_check_branch
      %27 = sbr.rel (0) target = $region17
    $region16: #{tpu_custom_call.1} parent=1 // pred_region
      %28 = dma.done [#allocation5], 256
    $region17: #{tpu_custom_call.1} parent=1 // pred_fallthru
      _
    %v29 = vld [vmem:[#allocation4] sm:$0xff]
    %v30 = vld [vmem:[#allocation4 + $0x8] sm:$0xff]
    %v31 = vmax.f32 %v29, 0.0
    %v32 = vmax.f32 %v30, 0.0
    %s33 = sld [smem:[#allocation2]]
    %s34 = sld [smem:[#allocation3]]
    %v35 = vmul.f32 %v31, %v31
    %v36 = vmul.f32 %v32, %v32
    %v37 = vstv %s33
    %v38 = vmul.f32 %v37, %v35
    %v39 = vmul.f32 %v37, %v36
    %v40 = vstv %s34
    %v41 = vadd.f32 %v38, %v40
    %v42 = vadd.f32 %v39, %v40
    %43 = vst [vmem:[#allocation7] sm:$0xff] %v41
    %44 = vst [vmem:[#allocation7 + $0x8] sm:$0xff] %v42
    // Predicated region
    $region18: #{tpu_custom_call.1} parent=1 // pred_check
      _
    $region19: #{tpu_custom_call.1} parent=1 // pred_check_branch
      %46 = sbr.rel (0) target = $region21
    $region20: #{tpu_custom_call.1} parent=1 // pred_region
      %s48 = ssub.s32 256, 256
      %49 = vsyncadd [#allocation6], %s48
      %s51 = sshll.u32 [#allocation7], 4
      %s52 = int_to_ptr.vmem [resolvable:$true] %s51
      %54 = dma.vmem_to_hbm [thread:$0]  %s52, 256, %s3, [#allocation6]
    $region21: #{tpu_custom_call.1} parent=1 // pred_fallthru
      _
    // Predicated region
    $region22: #{tpu_custom_call.1} parent=1 // pred_check
      _
    $region23: #{tpu_custom_call.1} parent=1 // pred_check_branch
      %56 = sbr.rel (0) target = $region25
    $region24: #{tpu_custom_call.1} parent=1 // pred_region
      %57 = dma.done [#allocation6], 256
    $region25: #{tpu_custom_call.1} parent=1 // pred_fallthru
      _
    %58 = vsyncpa [#allocation5], 1
    %59 = vsyncpa [#allocation6], 1

</llo_original>
